<compile_context>
chip_gen: v7x
topology: tpu7x:2x2x1
jax: 0.10.0
libtpu: 0.0.40
codegen_flags: <defaults>
</compile_context>

<pallas_src>
import math
from functools import partial

import jax
import jax.numpy as jnp
from jax.experimental import pallas as pl
from jax.experimental.pallas import tpu as pltpu


def _round_up(x, m):
    return (x + m - 1) // m * m


# --------------------- kernel 1: support = x_tile @ W ------------------------
def support_kernel(x_ref, w_ref, out_ref):
    out_ref[...] = jnp.dot(
        x_ref[...], w_ref[...], preferred_element_type=jnp.float32
    ).astype(out_ref.dtype)


# ------------- kernel 2: h1_tile = relu(adj_tile @ support + b1) -------------
def layer1_kernel(adj_ref, s_ref, b_ref, out_ref):
    agg = jnp.dot(adj_ref[...], s_ref[...], preferred_element_type=jnp.float32)
    h = jnp.maximum(agg + b_ref[...], 0.0)
    out_ref[...] = h.astype(out_ref.dtype)


# ------ kernel 3: out_tile = log_softmax((adj_tile @ h1) @ W2 + b2) ----------
def layer2_kernel(adj_ref, h_ref, w_ref, b_ref, out_ref, *, nclass):
    # Big N x N x nhid matmul first (output width = nhid_pad, MXU friendly).
    agg = jnp.dot(adj_ref[...], h_ref[...], preferred_element_type=jnp.float32)
    # Tiny projection to the (padded, lane-dense) class dim, f32 end to end.
    h2 = jnp.dot(agg, w_ref[...], preferred_element_type=jnp.float32) + b_ref[...]
    # Mask padded class lanes so they do not perturb the max / sum reductions.
    col = jax.lax.broadcasted_iota(jnp.int32, h2.shape, 1)
    valid = col < nclass
    h2 = jnp.where(valid, h2, -jnp.inf)
    m = jnp.max(h2, axis=1, keepdims=True)
    z = h2 - m
    lse = jnp.log(jnp.sum(jnp.exp(z), axis=1, keepdims=True))
    out_ref[...] = jnp.where(valid, z - lse, 0.0)


def gcn_forward(x, adj, w1, b1, w2, b2, *, tm=256):
    """Eval-mode GCN forward. x:[N,F], adj:[N,N] dense, returns [N, nclass]."""
    n, nfeat = x.shape
    nhid = w1.shape[1]
    nclass = w2.shape[1]

    f32, bf16 = jnp.float32, jnp.bfloat16

    # Row-block size and lane-dense padded dims.
    tm = min(tm, _round_up(n, 8))
    n_pad = _round_up(n, tm)
    nhid_pad = _round_up(nhid, 128)
    ncls_pad = _round_up(nclass, 128)

    # Pad + cast inputs. Matmul operands in bf16, biases / small W2 in f32.
    x_p = jnp.zeros((n_pad, nfeat), bf16).at[:n, :].set(x.astype(bf16))
    adj_p = jnp.zeros((n_pad, n_pad), bf16).at[:n, :n].set(adj.astype(bf16))
    w1_p = jnp.zeros((nfeat, nhid_pad), bf16).at[:, :nhid].set(w1.astype(bf16))
    b1_p = jnp.zeros((1, nhid_pad), f32).at[:, :nhid].set(
        b1.reshape(1, -1).astype(f32))
    w2_p = jnp.zeros((nhid_pad, ncls_pad), f32).at[:nhid, :nclass].set(
        w2.astype(f32))
    b2_p = jnp.zeros((1, ncls_pad), f32).at[:, :nclass].set(
        b2.reshape(1, -1).astype(f32))

    grid = (n_pad // tm,)
    params = pltpu.CompilerParams(
        dimension_semantics=("parallel",),
        vmem_limit_bytes=32 * 1024 * 1024,
    )

    resident = lambda shape: pl.BlockSpec(shape, lambda i: (0,) * len(shape))
    row_tile = lambda cols: pl.BlockSpec((tm, cols), lambda i: (i, 0))

    # ---- 1) support1 = x @ W1 (streamed rows of x, W1 resident) ----
    support1 = pl.pallas_call(
        support_kernel,
        out_shape=jax.ShapeDtypeStruct((n_pad, nhid_pad), bf16),
        grid=grid,
        in_specs=[row_tile(nfeat), resident((nfeat, nhid_pad))],
        out_specs=row_tile(nhid_pad),
        compiler_params=params,
    )(x_p, w1_p)

    # ---- 2) h1 = relu(adj @ support1 + b1) (adj rows streamed) ----
    h1 = pl.pallas_call(
        layer1_kernel,
        out_shape=jax.ShapeDtypeStruct((n_pad, nhid_pad), bf16),
        grid=grid,
        in_specs=[row_tile(n_pad),
                  resident((n_pad, nhid_pad)),
                  resident((1, nhid_pad))],
        out_specs=row_tile(nhid_pad),
        compiler_params=params,
    )(adj_p, support1, b1_p)

    # TODO(synk): dropout(h1) skipped — identity in eval mode.

    # ---- 3) out = log_softmax((adj @ h1) @ W2 + b2) (adj rows streamed) ----
    out_pad = pl.pallas_call(
        partial(layer2_kernel, nclass=nclass),
        out_shape=jax.ShapeDtypeStruct((n_pad, ncls_pad), f32),
        grid=grid,
        in_specs=[row_tile(n_pad),
                  resident((n_pad, nhid_pad)),
                  resident((nhid_pad, ncls_pad)),
                  resident((1, ncls_pad))],
        out_specs=row_tile(ncls_pad),
        compiler_params=params,
    )(adj_p, h1, w2_p, b2_p)

    return out_pad[:n, :nclass]


def init_gc_params(key, in_features, out_features):
    """Mirror GraphConvolution.reset_parameters: U(-stdv, stdv), stdv=1/sqrt(out)."""
    stdv = 1.0 / math.sqrt(out_features)
    kw, kb = jax.random.split(key)
    w = jax.random.uniform(kw, (in_features, out_features),
                           minval=-stdv, maxval=stdv, dtype=jnp.float32)
    b = jax.random.uniform(kb, (out_features,),
                           minval=-stdv, maxval=stdv, dtype=jnp.float32)
    return w, b


if __name__ == "__main__":
    # Small synthetic problem: 64 nodes, 16 input features, 32 hidden, 8 classes.
    N, NFEAT, NHID, NCLASS = 64, 16, 32, 8

    key = jax.random.PRNGKey(0)
    kx, kadj, k1, k2 = jax.random.split(key, 4)

    x = jax.random.normal(kx, (N, NFEAT), dtype=jnp.float32)

    # Symmetric, row-normalized dense adjacency (typical GCN preprocessing).
    a = (jax.random.uniform(kadj, (N, N)) < 0.1).astype(jnp.float32)
    a = jnp.maximum(a, a.T) + jnp.eye(N, dtype=jnp.float32)
    adj = a / jnp.sum(a, axis=1, keepdims=True)

    w1, b1 = init_gc_params(k1, NFEAT, NHID)
    w2, b2 = init_gc_params(k2, NHID, NCLASS)

    out = gcn_forward(x, adj, w1, b1, w2, b2)
    jax.block_until_ready(out)

    # ---- checks ----
    assert out.shape == (N, NCLASS)
    # rows of exp(log_softmax) should sum to ~1
    probs_sum = jnp.sum(jnp.exp(out), axis=1)
    assert bool(jnp.all(jnp.abs(probs_sum - 1.0) < 1e-4))

    # pure-JAX f32 reference (loose tolerance: adj/x/support run in bf16)
    support1_ref = x @ w1
    h1_ref = jnp.maximum(adj @ support1_ref + b1, 0.0)
    h2_ref = adj @ h1_ref @ w2 + b2
    ref = jax.nn.log_softmax(h2_ref, axis=1)
    assert bool(jnp.max(jnp.abs(out - ref)) < 5e-2)

    print("KERNEL_OK")
</pallas_src>

<mosaic_0001>
module attributes {stable_mosaic.version = 11 : i64} {
  func.func @support_kernel(%arg0: i32, %arg1: memref<64x16xbf16, #tpu.memory_space<vmem>>, %arg2: memref<16x128xbf16, #tpu.memory_space<vmem>>, %arg3: memref<64x128xbf16, #tpu.memory_space<vmem>>) attributes {dimension_semantics = [#tpu.dimension_semantics<parallel>], iteration_bounds = array<i64: 1>, scalar_prefetch = 0 : i64, scratch_operands = 0 : i64, tpu.core_type = #tpu.core_type<tc>, window_params = [{transform_indices = @transform_0, window_bounds = array<i64: 64, 16>}, {pipeline_mode = #tpu.pipeline_mode<synchronous>, transform_indices = @transform_1, window_bounds = array<i64: 16, 128>}, {transform_indices = @transform_2, window_bounds = array<i64: 64, 128>}]} {
    %c0 = arith.constant 0 : index
    %c0_0 = arith.constant 0 : index
    %0 = vector.load %arg1[%c0, %c0_0] : memref<64x16xbf16, #tpu.memory_space<vmem>>, vector<64x16xbf16>
    %c0_1 = arith.constant 0 : index
    %c0_2 = arith.constant 0 : index
    %1 = vector.load %arg2[%c0_1, %c0_2] : memref<16x128xbf16, #tpu.memory_space<vmem>>, vector<16x128xbf16>
    %cst = arith.constant dense<0.000000e+00> : vector<64x128xf32>
    %2 = tpu.matmul %0, %1, %cst {dimension_numbers = #tpu.dot_dimension_numbers<[1], [0], [0], [1], [0, 0, 1, 1], [], []>} : vector<64x16xbf16>, vector<16x128xbf16>, vector<64x128xf32> -> vector<64x128xf32>
    %3 = arith.truncf %2 : vector<64x128xf32> to vector<64x128xbf16>
    %c0_3 = arith.constant 0 : index
    %c0_4 = arith.constant 0 : index
    %4 = vector.load %arg3[%c0_3, %c0_4] : memref<64x128xbf16, #tpu.memory_space<vmem>>, vector<64x128xbf16>
    tpu.vector_store %arg3[%c0_3, %c0_4], %3 {strides = array<i32>} : memref<64x128xbf16, #tpu.memory_space<vmem>>, vector<64x128xbf16>,
    return
  }
  func.func @transform_0(%arg0: i32) -> (i32, i32) {
    %c0_i32 = arith.constant 0 : i32
    %c0_i32_0 = arith.constant 0 : i32
    return %arg0, %c0_i32 : i32, i32
  }
  func.func @transform_1(%arg0: i32) -> (i32, i32) {
    %c0_i32 = arith.constant 0 : i32
    %c0_i32_0 = arith.constant 0 : i32
    %c0_i32_1 = arith.constant 0 : i32
    return %c0_i32, %c0_i32_0 : i32, i32
  }
  func.func @transform_2(%arg0: i32) -> (i32, i32) {
    %c0_i32 = arith.constant 0 : i32
    %c0_i32_0 = arith.constant 0 : i32
    return %arg0, %c0_i32 : i32, i32
  }
}

</mosaic_0001>

<llo_original>
// kernel: tpu_custom_call.1
$region0: #{tpu_custom_call.1}
  #allocation0 [shape = 'u32[]', space=smem, size = 0x4, offset = 0x4, fixed_abs, tag = 'smem constant byte address 0x4 - core index']
  #allocation1 [shape = 'u32[144,128]{1,0:T(1,128)}', space=vmem, size = 0x12000, scoped, tag = 'internal scratch']
  %s0 = inlined_call_operand.vmem [shape: bf16[64,16], index: 0, kind: input, shape index: {}]
  %s1 = inlined_call_operand.vmem [shape: bf16[16,128], index: 1, kind: input, shape index: {}]
  %s2 = inlined_call_operand.hbm [shape: bf16[64,128], index: 2, kind: output, shape index: {}]
  %s3 = sld [smem:[#allocation0]]
  $region18: #{tpu_custom_call.1} parent=0
    _
  %s5 = ssub.s32 1, %s3
  %s6 = scalar_select 0, %s5, %s3
  $region1: #{tpu_custom_call.1} parent=0
    #allocation2 [shape = 'u8[16384]{0}', space=vmem, size = 0x4000, scoped, tag = 'output window, operand 0, single buffered']
    #allocation3 [shape = 's32[1]{0}', space=sflag, size = 0x4, scoped, tag = 'scoped memory for tpu_custom_call.1']
    %7 = vsyncpa [#allocation3], 0
    // Predicated region
    $region2: #{tpu_custom_call.1} parent=1 // pred_check
      _
    $region3: #{tpu_custom_call.1} parent=1 // pred_check_branch
      %9 = sbr.rel (0) target = $region5
    $region4: #{tpu_custom_call.1} parent=1 // pred_region
      _
    $region5: #{tpu_custom_call.1} parent=1 // pred_fallthru
      _
    // Predicated region
    $region6: #{tpu_custom_call.1} parent=1 // pred_check
      _
    $region7: #{tpu_custom_call.1} parent=1 // pred_check_branch
      %11 = sbr.rel (0) target = $region9
    $region8: #{tpu_custom_call.1} parent=1 // pred_region
      _
    $region9: #{tpu_custom_call.1} parent=1 // pred_fallthru
      _
    %v13 = vld [vmem:[%s0] sm:$0xf]
    %v14 = vld [vmem:[%s0 + $0x4] sm:$0xf]
    %v15 = vld [vmem:[%s0 + $0x8] sm:$0xf]
    %v16 = vld [vmem:[%s0 + $0xc] sm:$0xf]
    %v17 = vld [vmem:[%s0 + $0x10] sm:$0xf]
    %v18 = vld [vmem:[%s0 + $0x14] sm:$0xf]
    %v19 = vld [vmem:[%s0 + $0x18] sm:$0xf]
    %v20 = vld [vmem:[%s0 + $0x1c] sm:$0xf]
    %v21 = vld [vmem:[%s1] sm:$0xf]
    %v22 = vld [vmem:[%s1 + $0x4] sm:$0xf]
    %v31 = vunpack.c.l.b16 %v13
    %v32 = vunpack.c.l.b16 %v14
    %v33 = vunpack.c.l.b16 %v15
    %v34 = vunpack.c.l.b16 %v16
    %v35 = vunpack.c.l.b16 %v17
    %v36 = vunpack.c.l.b16 %v18
    %v37 = vunpack.c.l.b16 %v19
    %v38 = vunpack.c.l.b16 %v20
    %v39 = vpack.c.b16 %v32, %v31
    %v40 = vpack.c.b16 %v34, %v33
    %v41 = vpack.c.b16 %v36, %v35
    %v42 = vpack.c.b16 %v38, %v37
    %v45 = vunpack.c.l.b16 %v21
    %v46 = vunpack.c.l.b16 %v22
    %v47 = vpack.c.b16 %v46, %v45
    %vm49 = vcmask 130048
    %v51 = vsel %vm49, %v39, 0
    %v54 = vsel %vm49, %v40, 0
    %v57 = vsel %vm49, %v41, 0
    %v60 = vsel %vm49, %v42, 0
    %62 = vmatprep.subr.bf16.mxu0 0
    %63 = vmatpush1.bf16.msra.mxu0 %v47
    %64 = vmatprep.subr.bf16.mxu0 0
    %65 = vmatpush1.bf16.msra.mxu0 0
    %66 = vmatprep.subr.bf16.mxu0 0
    %67 = vmatpush1.bf16.msra.mxu0 0
    %68 = vmatprep.subr.bf16.mxu0 0
    %69 = vmatpush1.bf16.msra.mxu0 0
    %70 = vmatprep.subr.bf16.mxu0 0
    %71 = vmatpush1.bf16.msra.mxu0 0
    %72 = vmatprep.subr.bf16.mxu0 0
    %73 = vmatpush1.bf16.msra.mxu0 0
    %74 = vmatprep.subr.bf16.mxu0 0
    %75 = vmatpush1.bf16.msra.mxu0 0
    %76 = vmatprep.subr.bf16.mxu0 0
    %77 = vmatpush1.bf16.msra.mxu0 0
    %78 = vmatprep.subr.bf16.mxu0 0
    %79 = vmatpush1.bf16.msra.mxu0 0
    %80 = vmatprep.subr.bf16.mxu0 0
    %81 = vmatpush1.bf16.msra.mxu0 0
    %82 = vmatprep.subr.bf16.mxu0 0
    %83 = vmatpush1.bf16.msra.mxu0 0
    %84 = vmatprep.subr.bf16.mxu0 0
    %85 = vmatpush1.bf16.msra.mxu0 0
    %86 = vmatprep.subr.bf16.mxu0 0
    %87 = vmatpush1.bf16.msra.mxu0 0
    %88 = vmatprep.subr.bf16.mxu0 0
    %89 = vmatpush1.bf16.msra.mxu0 0
    %90 = vmatprep.subr.bf16.mxu0 0
    %91 = vmatpush1.bf16.msra.mxu0 0
    %92 = vmatprep.subr.bf16.mxu0 0
    %93 = vmatpush1.bf16.msra.mxu0 0
    %94 = vmatprep.mubr.bf16.mxu0 0
    %95 = vmatmul.mubr.bf16.gmra.mrb[0].mxu0 %v51
    %v96 = vpop.f32.mrb[0].mxu0
    %v97 = vadd.f32 0.0, %v96
    %v98 = vpop.f32.mrb[0].mxu0
    %v99 = vpop.f32.mrb[0].mxu0
    %v100 = vadd.f32 0.0, %v99
    %v101 = vpop.f32.mrb[0].mxu0
    %102 = vmatprep.mubr.bf16.mxu0 0
    %103 = vmatmul.mubr.bf16.gmra.mrb[0].mxu0 %v54
    %v104 = vpop.f32.mrb[0].mxu0
    %v105 = vadd.f32 0.0, %v104
    %v106 = vpop.f32.mrb[0].mxu0
    %v107 = vpop.f32.mrb[0].mxu0
    %v108 = vadd.f32 0.0, %v107
    %v109 = vpop.f32.mrb[0].mxu0
    %110 = vmatprep.mubr.bf16.mxu0 0
    %111 = vmatmul.mubr.bf16.gmra.mrb[0].mxu0 %v57
    %v112 = vpop.f32.mrb[0].mxu0
    %v113 = vadd.f32 0.0, %v112
    %v114 = vpop.f32.mrb[0].mxu0
    %v115 = vpop.f32.mrb[0].mxu0
    %v116 = vadd.f32 0.0, %v115
    %v117 = vpop.f32.mrb[0].mxu0
    %118 = vmatprep.mubr.bf16.mxu0 0
    %119 = vmatmul.mubr.bf16.gmra.mrb[0].mxu0 %v60
    %v120 = vpop.f32.mrb[0].mxu0
    %v121 = vadd.f32 0.0, %v120
    %v122 = vpop.f32.mrb[0].mxu0
    %v123 = vpop.f32.mrb[0].mxu0
    %v124 = vadd.f32 0.0, %v123
    %v125 = vpop.f32.mrb[0].mxu0
    %126 = vdwg.mxu0
    %v127 = vpack.c.bf16 %v100, %v97
    %v128 = vpack.c.bf16 %v108, %v105
    %v129 = vpack.c.bf16 %v116, %v113
    %v130 = vpack.c.bf16 %v124, %v121
    %v135 = vunpack.c.l.b16 %v127
    %v136 = vunpack.c.h.b16 %v127
    %v137 = vunpack.c.l.b16 %v128
    %v138 = vunpack.c.h.b16 %v128
    %v139 = vunpack.c.l.b16 %v129
    %v140 = vunpack.c.h.b16 %v129
    %v141 = vunpack.c.l.b16 %v130
    %v142 = vunpack.c.h.b16 %v130
    %v143 = vpack.c.b16 %v135, %v135
    %v144 = vpack.c.b16 %v136, %v136
    %v145 = vpack.c.b16 %v137, %v137
    %v146 = vpack.c.b16 %v138, %v138
    %v147 = vpack.c.b16 %v139, %v139
    %v148 = vpack.c.b16 %v140, %v140
    %v149 = vpack.c.b16 %v141, %v141
    %v150 = vpack.c.b16 %v142, %v142
    %159 = vst [vmem:[#allocation2] sm:$0xf] %v143
    %160 = vst [vmem:[#allocation2 + $0x4] sm:$0xf] %v144
    %161 = vst [vmem:[#allocation2 + $0x8] sm:$0xf] %v145
    %162 = vst [vmem:[#allocation2 + $0xc] sm:$0xf] %v146
    %163 = vst [vmem:[#allocation2 + $0x10] sm:$0xf] %v147
    %164 = vst [vmem:[#allocation2 + $0x14] sm:$0xf] %v148
    %165 = vst [vmem:[#allocation2 + $0x18] sm:$0xf] %v149
    %166 = vst [vmem:[#allocation2 + $0x1c] sm:$0xf] %v150
    // Predicated region
    $region10: #{tpu_custom_call.1} parent=1 // pred_check
      _
    $region11: #{tpu_custom_call.1} parent=1 // pred_check_branch
      %168 = sbr.rel (0) target = $region13
    $region12: #{tpu_custom_call.1} parent=1 // pred_region
      %s170 = ssub.s32 512, 512
      %171 = vsyncadd [#allocation3], %s170
      %s172 = sshll.u32 [#allocation2], 4
      %s173 = int_to_ptr.vmem [resolvable:$true] %s172
      %178 = dma.vmem_to_hbm [thread:$0]  %s173, 512, %s2, [#allocation3], 64, 64, 4
    $region13: #{tpu_custom_call.1} parent=1 // pred_fallthru
      _
    // Predicated region
    $region14: #{tpu_custom_call.1} parent=1 // pred_check
      _
    $region15: #{tpu_custom_call.1} parent=1 // pred_check_branch
      %180 = sbr.rel (0) target = $region17
    $region16: #{tpu_custom_call.1} parent=1 // pred_region
      %181 = dma.done [#allocation3], 512
    $region17: #{tpu_custom_call.1} parent=1 // pred_fallthru
      _
    %182 = vsyncpa [#allocation3], 1

</llo_original>
